<compile_context>
chip_gen: v5e
topology: v5e:2x2
jax: 0.10.0
libtpu: 0.0.40
codegen_flags: <defaults>
</compile_context>

<pallas_src>
import jax
import jax.numpy as jnp
from jax.experimental import pallas as pl
from jax.experimental.pallas import tpu as pltpu


def _round_up(a, m):
    return ((a + m - 1) // m) * m


# ----------------------------------------------------------------------------
# Fused kernel: theta-conv + add(phi) + relu + psi-projection + sigmoid
# ----------------------------------------------------------------------------
def _attn_fused_kernel(x_ref, phi_ref, wt_ref, wp_ref, bp_ref, o_ref):
    # x_ref:   (1, C, TN) bf16  input feature tile, channel-major
    # phi_ref: (1, C, TN) bf16  upsampled phi(g) tile (theta+phi biases folded in)
    # wt_ref:  (C, C)     bf16  theta 1x1-conv weight
    # wp_ref:  (C, 1)     f32   psi 1x1-conv weight (C -> 1)
    # bp_ref:  (1,)       f32   psi bias (SMEM scalar)
    # o_ref:   (1, 1, TN) f32   sigmoid(psi(relu(theta_x + phi_g)))
    x = x_ref[0]                                                        # (C, TN)

    # theta 1x1 conv as a channel matmul on the MXU; accumulate in f32.
    theta = jnp.dot(wt_ref[...], x, preferred_element_type=jnp.float32)

    # f = relu(theta_x + phi_g); conv biases were pre-folded into the phi tile.
    f = jnp.maximum(theta + phi_ref[0].astype(jnp.float32), 0.0)        # (C, TN)

    # psi projection C -> 1 on the VPU (+ small sublane reduce); bias from SMEM.
    psi = jnp.sum(wp_ref[...] * f, axis=0, keepdims=True) + bp_ref[0]   # (1, TN)

    # sigmoid = 1 / (1 + exp(-psi)); exp and the approx reciprocal both ride the
    # EUP slot, keeping the epilogue off the vector ALU.
    o_ref[0] = pl.reciprocal(1.0 + jnp.exp(-psi), approx=True)


# ----------------------------------------------------------------------------
# Tile-size selection
# ----------------------------------------------------------------------------
def _choose_spatial_tile(hw, c, batch, max_tile, tile_vmem_budget):
    """Pick the lane-axis tile size (a multiple of 128)."""
    tn = min(_round_up(hw, 128), max_tile)
    # Rough per-lane VMEM bytes: double-buffered bf16 x + phi tiles (2*2*2*C)
    # plus ~2 live f32 (C, tn) temporaries (theta, f) inside the kernel.
    per_lane = c * (2 * 2 * 2 + 2 * 4)
    cap = max(128, (tile_vmem_budget // per_lane) // 128 * 128)
    tn = min(tn, cap)
    # v7x has 2 TensorCores sharded over "parallel" grid axes: when batch == 1
    # make sure there are >= 2 spatial tiles so both cores get work.
    if batch == 1 and tn >= hw and hw > 128:
        tn = max(128, _round_up((hw + 1) // 2, 128))
    return tn


# ----------------------------------------------------------------------------
# Host-side wrapper reproducing Attention.forward
# ----------------------------------------------------------------------------
def attention_forward(x_nchw, g_nchw, params, max_tile=4096):
    B, C, H, W = x_nchw.shape
    Bg, Cg, Hg, Wg = g_nchw.shape
    assert B == Bg and C == Cg
    HW = H * W

    compute_dtype = jnp.bfloat16

    # Weights in the natural PyTorch (Cout, Cin) orientation (channel-major).
    w_theta = params["w_theta"].astype(compute_dtype)                  # (C, C)
    w_psi = params["w_psi"].reshape(C, 1).astype(jnp.float32)          # (C, 1)
    b_psi = params["b_psi"].reshape(1).astype(jnp.float32)             # (1,) SMEM

    # --- phi branch: 1x1 conv on the *coarse* gating signal, then bilinear
    # upsample to x's spatial size (the exact PyTorch op order).  Both conv
    # biases are folded in here (interp weights sum to 1 so constants pass
    # through the resize) and the only full-resolution intermediate is bf16.
    b_fold = (params["b_theta"] + params["b_phi"]).astype(jnp.float32)
    phi_coarse = (jnp.einsum("oc,bchw->bohw",
                             params["w_phi"].astype(jnp.float32),
                             g_nchw.astype(jnp.float32))
                  + b_fold[None, :, None, None])                       # (B,C,Hg,Wg)
    # jax.image.resize 'bilinear' uses half-pixel centers, matching PyTorch
    # F.upsample / F.interpolate with align_corners=False (current default).
    # TODO(synk): if a reference checkpoint used align_corners=True, substitute
    # an explicit interpolation matrix here.
    phi_up = jax.image.resize(phi_coarse, (B, C, H, W), method="bilinear")
    phi_r = phi_up.astype(compute_dtype).reshape(B, C, HW)
    # TODO(synk): fusing the bilinear upsample itself into the kernel (coarse-row
    # fetch via scalar-prefetch index_map + in-kernel lerp) would cut HBM
    # traffic roughly another 2x; not done here to keep the kernel simple.

    # x in channel-major (C, HW) bf16; NCHW already flattens this way (no copy
    # beyond the dtype cast — upstream layers would hand us bf16 directly).
    x_r = x_nchw.astype(compute_dtype).reshape(B, C, HW)

    tn = _choose_spatial_tile(HW, C, B, max_tile,
                              tile_vmem_budget=24 * 1024 * 1024)
    grid = (B, pl.cdiv(HW, tn))
    # No pad-to-tile copy: if tn does not divide HW, the ragged last block reads
    # (and discards) out-of-bounds lanes and its out-of-bounds writes are masked.

    out_flat = pl.pallas_call(
        _attn_fused_kernel,
        out_shape=jax.ShapeDtypeStruct((B, 1, HW), jnp.float32),
        grid_spec=pltpu.PrefetchScalarGridSpec(
            num_scalar_prefetch=0,
            grid=grid,
            in_specs=[
                pl.BlockSpec((1, C, tn), lambda b, j: (b, 0, j)),     # x tile
                pl.BlockSpec((1, C, tn), lambda b, j: (b, 0, j)),     # phi tile
                pl.BlockSpec((C, C), lambda b, j: (0, 0)),            # W_theta
                pl.BlockSpec((C, 1), lambda b, j: (0, 0)),            # w_psi col
                pl.BlockSpec(memory_space=pltpu.MemorySpace.SMEM),    # b_psi
            ],
            out_specs=pl.BlockSpec((1, 1, tn), lambda b, j: (b, 0, j)),
        ),
        compiler_params=pltpu.CompilerParams(
            dimension_semantics=("parallel", "parallel"),
            # Default scoped VMEM is 16 MiB (v5e) / 32 MiB (v6e, v7x); raise it
            # but stay <= ~48 MiB so 64 MiB-per-TC v7x keeps headroom.
            vmem_limit_bytes=48 * 1024 * 1024,
        ),
    )(x_r, phi_r, w_theta, w_psi, b_psi)

    # (B, 1, HW) -> (B, 1, H, W), already NCHW like the PyTorch module.
    return out_flat.reshape(B, 1, H, W)


# ----------------------------------------------------------------------------
# Pure-JAX f32 reference (for self-check) and parameter init
# ----------------------------------------------------------------------------
def attention_reference(x, g, params):
    B, C, H, W = x.shape
    theta = (jnp.einsum("oc,bchw->bohw", params["w_theta"], x)
             + params["b_theta"][None, :, None, None])
    phi_c = (jnp.einsum("oc,bchw->bohw", params["w_phi"], g)
             + params["b_phi"][None, :, None, None])
    phi = jax.image.resize(phi_c, (B, C, H, W), method="bilinear")
    f = jnp.maximum(theta + phi, 0.0)
    psi = (jnp.einsum("c,bchw->bhw", params["w_psi"], f)[:, None, :, :]
           + params["b_psi"].reshape(1, 1, 1, 1))
    return jax.nn.sigmoid(psi)


def init_params(key, in_channels):
    C = in_channels
    k = jax.random.split(key, 6)
    scale = 1.0 / jnp.sqrt(C)   # PyTorch Conv2d default: U(-1/sqrt(fan_in), ...)
    return {
        # PyTorch conv weight is (Cout, Cin, 1, 1); stored squeezed as (Cout, Cin).
        "w_theta": jax.random.uniform(k[0], (C, C), jnp.float32, -scale, scale),
        "b_theta": jax.random.uniform(k[1], (C,), jnp.float32, -scale, scale),
        "w_phi":   jax.random.uniform(k[2], (C, C), jnp.float32, -scale, scale),
        "b_phi":   jax.random.uniform(k[3], (C,), jnp.float32, -scale, scale),
        "w_psi":   jax.random.uniform(k[4], (C,), jnp.float32, -scale, scale),
        "b_psi":   jax.random.uniform(k[5], (1,), jnp.float32, -scale, scale),
    }


if __name__ == "__main__":
    key = jax.random.PRNGKey(0)
    kx, kg, kp = jax.random.split(key, 3)

    B, C, H, W = 2, 4, 16, 16       # x: feature map
    Hg, Wg = 8, 8                   # g: coarser gating signal -> exercises upsample

    x = jax.random.normal(kx, (B, C, H, W), jnp.float32)
    g = jax.random.normal(kg, (B, C, Hg, Wg), jnp.float32)
    params = init_params(kp, C)

    fwd = jax.jit(attention_forward)
    out = fwd(x, g, params)
    out = jax.block_until_ready(out)

    ref = attention_reference(x, g, params)

    assert out.shape == (B, 1, H, W)
    assert bool(jnp.all(jnp.isfinite(out)))
    assert bool(jnp.all((out >= 0.0) & (out <= 1.0)))        # sigmoid range
    assert bool(jnp.max(jnp.abs(out - ref)) < 1e-2)          # matches f32 reference
    print("KERNEL_OK")
</pallas_src>

<mosaic_0001>
module attributes {stable_mosaic.version = 11 : i64} {
  func.func @_attn_fused_kernel(%arg0: i32, %arg1: i32, %arg2: memref<1x4x256xbf16, #tpu.memory_space<vmem>>, %arg3: memref<1x4x256xbf16, #tpu.memory_space<vmem>>, %arg4: memref<4x4xbf16, #tpu.memory_space<vmem>>, %arg5: memref<4x1xf32, #tpu.memory_space<vmem>>, %arg6: memref<1xf32, #tpu.memory_space<smem>>, %arg7: memref<1x1x256xf32, #tpu.memory_space<vmem>>) attributes {dimension_semantics = [#tpu.dimension_semantics<parallel>, #tpu.dimension_semantics<parallel>], iteration_bounds = array<i64: 2, 1>, scalar_prefetch = 0 : i64, scratch_operands = 0 : i64, tpu.core_type = #tpu.core_type<tc>, window_params = [{transform_indices = @transform_0, window_bounds = array<i64: 1, 4, 256>}, {transform_indices = @transform_1, window_bounds = array<i64: 1, 4, 256>}, {pipeline_mode = #tpu.pipeline_mode<synchronous>, transform_indices = @transform_2, window_bounds = array<i64: 4, 4>}, {pipeline_mode = #tpu.pipeline_mode<synchronous>, transform_indices = @transform_3, window_bounds = array<i64: 4, 1>}, {transform_indices = @transform_4, window_bounds = array<i64: 1>}, {transform_indices = @transform_5, window_bounds = array<i64: 1, 1, 256>}]} {
    %c0 = arith.constant 0 : index
    %c0_0 = arith.constant 0 : index
    %c0_1 = arith.constant 0 : index
    %0 = vector.load %arg2[%c0, %c0_0, %c0_1] : memref<1x4x256xbf16, #tpu.memory_space<vmem>>, vector<1x4x256xbf16>
    %1 = vector.shape_cast %0 : vector<1x4x256xbf16> to vector<4x256xbf16>
    %c0_2 = arith.constant 0 : index
    %c0_3 = arith.constant 0 : index
    %2 = vector.load %arg4[%c0_2, %c0_3] : memref<4x4xbf16, #tpu.memory_space<vmem>>, vector<4x4xbf16>
    %cst = arith.constant dense<0.000000e+00> : vector<4x256xf32>
    %3 = tpu.matmul %2, %1, %cst {dimension_numbers = #tpu.dot_dimension_numbers<[1], [0], [0], [1], [0, 0, 1, 1], [], []>} : vector<4x4xbf16>, vector<4x256xbf16>, vector<4x256xf32> -> vector<4x256xf32>
    %c0_4 = arith.constant 0 : index
    %c0_5 = arith.constant 0 : index
    %c0_6 = arith.constant 0 : index
    %4 = vector.load %arg3[%c0_4, %c0_5, %c0_6] : memref<1x4x256xbf16, #tpu.memory_space<vmem>>, vector<1x4x256xbf16>
    %5 = vector.shape_cast %4 : vector<1x4x256xbf16> to vector<4x256xbf16>
    %6 = arith.extf %5 : vector<4x256xbf16> to vector<4x256xf32>
    %7 = arith.addf %3, %6 : vector<4x256xf32>
    %cst_7 = arith.constant 0.000000e+00 : f32
    %8 = vector.broadcast %cst_7 : f32 to vector<4x256xf32>
    %9 = arith.maximumf %7, %8 : vector<4x256xf32>
    %c0_8 = arith.constant 0 : index
    %c0_9 = arith.constant 0 : index
    %10 = vector.load %arg5[%c0_8, %c0_9] : memref<4x1xf32, #tpu.memory_space<vmem>>, vector<4x1xf32>
    %11 = vector.broadcast %10 : vector<4x1xf32> to vector<4x256xf32>
    %12 = arith.mulf %11, %9 : vector<4x256xf32>
    %cst_10 = arith.constant dense<0.000000e+00> : vector<256xf32>
    %13 = vector.multi_reduction <add>, %12, %cst_10 [0] : vector<4x256xf32> to vector<256xf32>
    %14 = vector.shape_cast %13 : vector<256xf32> to vector<1x256xf32>
    %c0_11 = arith.constant 0 : index
    %15 = memref.load %arg6[%c0_11] : memref<1xf32, #tpu.memory_space<smem>>
    %16 = vector.broadcast %15 : f32 to vector<1x256xf32>
    %17 = arith.addf %14, %16 : vector<1x256xf32>
    %cst_12 = arith.constant 0.000000e+00 : f32
    %18 = vector.broadcast %cst_12 : f32 to vector<1x256xf32>
    %19 = arith.subf %18, %17 : vector<1x256xf32>
    %20 = math.exp %19 : vector<1x256xf32>
    %cst_13 = arith.constant 1.000000e+00 : f32
    %21 = vector.broadcast %cst_13 : f32 to vector<1x256xf32>
    %22 = arith.addf %21, %20 : vector<1x256xf32>
    %23 = tpu.reciprocal %22 {approx = true} : vector<1x256xf32> -> vector<1x256xf32>
    %c0_14 = arith.constant 0 : index
    %c0_15 = arith.constant 0 : index
    %c0_16 = arith.constant 0 : index
    %24 = vector.load %arg7[%c0_14, %c0_15, %c0_16] : memref<1x1x256xf32, #tpu.memory_space<vmem>>, vector<1x1x256xf32>
    %25 = vector.shape_cast %24 : vector<1x1x256xf32> to vector<1x256xf32>
    %26 = vector.shape_cast %23 : vector<1x256xf32> to vector<1x1x256xf32>
    tpu.vector_store %arg7[%c0_14, %c0_15, %c0_16], %26 {strides = array<i32>} : memref<1x1x256xf32, #tpu.memory_space<vmem>>, vector<1x1x256xf32>,
    return
  }
  func.func @transform_0(%arg0: i32, %arg1: i32) -> (i32, i32, i32) {
    %c0_i32 = arith.constant 0 : i32
    %c0_i32_0 = arith.constant 0 : i32
    return %arg0, %c0_i32, %arg1 : i32, i32, i32
  }
  func.func @transform_1(%arg0: i32, %arg1: i32) -> (i32, i32, i32) {
    %c0_i32 = arith.constant 0 : i32
    %c0_i32_0 = arith.constant 0 : i32
    return %arg0, %c0_i32, %arg1 : i32, i32, i32
  }
  func.func @transform_2(%arg0: i32, %arg1: i32) -> (i32, i32) {
    %c0_i32 = arith.constant 0 : i32
    %c0_i32_0 = arith.constant 0 : i32
    %c0_i32_1 = arith.constant 0 : i32
    return %c0_i32, %c0_i32_0 : i32, i32
  }
  func.func @transform_3(%arg0: i32, %arg1: i32) -> (i32, i32) {
    %c0_i32 = arith.constant 0 : i32
    %c0_i32_0 = arith.constant 0 : i32
    %c0_i32_1 = arith.constant 0 : i32
    return %c0_i32, %c0_i32_0 : i32, i32
  }
  func.func @transform_4(%arg0: i32, %arg1: i32) -> i32 {
    %c0_i32 = arith.constant 0 : i32
    %c0_i32_0 = arith.constant 0 : i32
    return %c0_i32 : i32
  }
  func.func @transform_5(%arg0: i32, %arg1: i32) -> (i32, i32, i32) {
    %c0_i32 = arith.constant 0 : i32
    %c0_i32_0 = arith.constant 0 : i32
    return %arg0, %c0_i32, %arg1 : i32, i32, i32
  }
}

</mosaic_0001>

<llo_original>
// kernel: attention_forward.1
$region0: #{attention_forward.1}
  #allocation0 [shape = 'u32[]', space=smem, size = 0x4, offset = 0x4, fixed_abs, tag = 'smem constant byte address 0x4 - core index']
  #allocation1 [shape = 'u32[72,128]{1,0:T(1,128)}', space=vmem, size = 0x9000, scoped, tag = 'internal scratch']
  #allocation2 [shape = 'f32[1]{0:T(128)S(6)}', space=smem, size = 0x200, scoped, tag = 'scoped memory for attention_forward.1']
  %s0 = inlined_call_operand.vmem [shape: bf16[2,4,256], index: 0, kind: input, shape index: {}]
  %s1 = inlined_call_operand.vmem [shape: bf16[2,4,256], index: 1, kind: input, shape index: {}]
  %s2 = inlined_call_operand.vmem [shape: bf16[4,4], index: 2, kind: input, shape index: {}]
  %s3 = inlined_call_operand.vmem [shape: f32[4,1], index: 3, kind: input, shape index: {}]
  %s4 = inlined_call_operand.<no memory space> [shape: f32[1], index: 4, kind: input, shape index: {}]
  %s5 = inlined_call_operand.vmem [shape: f32[2,1,256], index: 5, kind: output, shape index: {}]
  %s6 = sld [smem:[#allocation0]]
  $region53: #{attention_forward.1} parent=0
    _
  %s8 = ssub.s32 1, %s6
  %s9 = scalar_select 0, %s8, %s6
  %10 = sst [smem:[#allocation2]] %s4
  loop: start=0, step=1, limit=4
  $region2: #{attention_forward.1} parent=0 // loop_pre_header
    _
  $region3: #{attention_forward.1} parent=0 // loop_header
    %s12 = sphi 0, %s16
    %p13 = scmp.ge.s32.totalorder %s12, 4
    %s19 = sphi 0, %s31
    %s20 = sphi 0, %s27
    %s21 = sphi 0, %s19
    %s22 = sphi 0, %s20
    %s23 = sphi 0, %s21
    %s24 = sphi 0, %s22
    %s36 = sphi 0, %s38
    %s39 = sphi 0, %s36
    %s40 = sphi 0, %s39
    %s56 = sphi 0, %s40
    %s64 = sphi 0, %s66
    %s67 = sphi 0, %s64
    %s68 = sphi 0, %s67
    %s84 = sphi 0, %s68
    %s88 = sphi 0, %s88
    %s90 = sphi 0, %s88
    %s91 = sphi 0, %s90
    %s105 = sphi 0, %s91
    %s109 = sphi 0, %s109
    %s111 = sphi 0, %s109
    %s112 = sphi 0, %s111
    %s126 = sphi 0, %s112
    %s130 = sphi 0, %s130
    %s132 = sphi 0, %s130
    %s133 = sphi 0, %s132
    %s147 = sphi 0, %s133
    %s155 = sphi 0, %s157
    %s158 = sphi 0, %s155
    %s159 = sphi 0, %s158
    %s175 = sphi 0, %s159
  $region4: #{attention_forward.1} parent=0 // loop_header_branch
    %15 = sbr.rel (%p13) target = $region8
  $region5: #{attention_forward.1} parent=0 // loop_body
    %s17 = ssub.s32 %s12, 1
    %s18 = ssub.s32 %s12, 2
    %s25 = sadd.s32 1, %s20
    %p26 = scmp.ge.s32.totalorder %s25, 1
    %s27 = scalar_select %p26, 0, %s25
    %s28 = sadd.s32 1, %s19
    %s29 = scalar_select %p26, %s28, %s19
    %p30 = scmp.ge.s32.totalorder %s29, 2
    %s31 = scalar_select %p30, 0, %s29
    %s32 = ssub.s32 %s19, %s31
    %s33 = ssub.s32 %s20, %s27
    %s34 = sor.u32 %s32, %s33
    %p35 = scmp.eq.s32.totalorder %s34, 0
    %s37 = sadd.s32 %s36, 1
    %s38 = scalar_select %p35, %s36, %s37
    %p41 = pneg %p35
    %p42 = scmp.eq.s32.totalorder %s12, 1
    %p43 = por %p41, %p42
    %p44 = scmp.ne.s32.totalorder %s36, %s39
    %p45 = scmp.eq.s32.totalorder %s12, 0
    %p46 = por %p44, %p45
    %p47 = scmp.ne.s32.totalorder %s36, %s39
    %p48 = scmp.eq.s32.totalorder %s17, 1
    %p49 = por %p47, %p48
    %p50 = scmp.ne.s32.totalorder %s39, %s40
    %p51 = scmp.eq.s32.totalorder %s17, 0
    %p52 = por %p50, %p51
    %p53 = scmp.ne.s32.totalorder %s39, %s40
    %p54 = scmp.eq.s32.totalorder %s18, 1
    %p55 = por %p53, %p54
    %p57 = scmp.ne.s32.totalorder %s40, %s56
    %p58 = scmp.eq.s32.totalorder %s18, 0
    %p59 = por %p57, %p58
    %s60 = ssub.s32 %s19, %s31
    %s61 = ssub.s32 %s20, %s27
    %s62 = sor.u32 %s60, %s61
    %p63 = scmp.eq.s32.totalorder %s62, 0
    %s65 = sadd.s32 %s64, 1
    %s66 = scalar_select %p63, %s64, %s65
    %p69 = pneg %p63
    %p70 = scmp.eq.s32.totalorder %s12, 1
    %p71 = por %p69, %p70
    %p72 = scmp.ne.s32.totalorder %s64, %s67
    %p73 = scmp.eq.s32.totalorder %s12, 0
    %p74 = por %p72, %p73
    %p75 = scmp.ne.s32.totalorder %s64, %s67
    %p76 = scmp.eq.s32.totalorder %s17, 1
    %p77 = por %p75, %p76
    %p78 = scmp.ne.s32.totalorder %s67, %s68
    %p79 = scmp.eq.s32.totalorder %s17, 0
    %p80 = por %p78, %p79
    %p81 = scmp.ne.s32.totalorder %s67, %s68
    %p82 = scmp.eq.s32.totalorder %s18, 1
    %p83 = por %p81, %p82
    %p85 = scmp.ne.s32.totalorder %s68, %s84
    %p86 = scmp.eq.s32.totalorder %s18, 0
    %p87 = por %p85, %p86
    %s89 = sadd.s32 %s88, 1
    %p92 = scmp.eq.s32.totalorder %s12, 1
    %p93 = scmp.ne.s32.totalorder %s88, %s90
    %p94 = scmp.eq.s32.totalorder %s12, 0
    %p95 = por %p93, %p94
    %p96 = scmp.ne.s32.totalorder %s88, %s90
    %p97 = scmp.eq.s32.totalorder %s17, 1
    %p98 = por %p96, %p97
    %p99 = scmp.ne.s32.totalorder %s90, %s91
    %p100 = scmp.eq.s32.totalorder %s17, 0
    %p101 = por %p99, %p100
    %p102 = scmp.ne.s32.totalorder %s90, %s91
    %p103 = scmp.eq.s32.totalorder %s18, 1
    %p104 = por %p102, %p103
    %p106 = scmp.ne.s32.totalorder %s91, %s105
    %p107 = scmp.eq.s32.totalorder %s18, 0
    %p108 = por %p106, %p107
    %s110 = sadd.s32 %s109, 1
    %p113 = scmp.eq.s32.totalorder %s12, 1
    %p114 = scmp.ne.s32.totalorder %s109, %s111
    %p115 = scmp.eq.s32.totalorder %s12, 0
    %p116 = por %p114, %p115
    %p117 = scmp.ne.s32.totalorder %s109, %s111
    %p118 = scmp.eq.s32.totalorder %s17, 1
    %p119 = por %p117, %p118
    %p120 = scmp.ne.s32.totalorder %s111, %s112
    %p121 = scmp.eq.s32.totalorder %s17, 0
    %p122 = por %p120, %p121
    %p123 = scmp.ne.s32.totalorder %s111, %s112
    %p124 = scmp.eq.s32.totalorder %s18, 1
    %p125 = por %p123, %p124
    %p127 = scmp.ne.s32.totalorder %s112, %s126
    %p128 = scmp.eq.s32.totalorder %s18, 0
    %p129 = por %p127, %p128
    %s131 = sadd.s32 %s130, 1
    %p134 = scmp.eq.s32.totalorder %s12, 1
    %p135 = scmp.ne.s32.totalorder %s130, %s132
    %p136 = scmp.eq.s32.totalorder %s12, 0
    %p137 = por %p135, %p136
    %p138 = scmp.ne.s32.totalorder %s130, %s132
    %p139 = scmp.eq.s32.totalorder %s17, 1
    %p140 = por %p138, %p139
    %p141 = scmp.ne.s32.totalorder %s132, %s133
    %p142 = scmp.eq.s32.totalorder %s17, 0
    %p143 = por %p141, %p142
    %p144 = scmp.ne.s32.totalorder %s132, %s133
    %p145 = scmp.eq.s32.totalorder %s18, 1
    %p146 = por %p144, %p145
    %p148 = scmp.ne.s32.totalorder %s133, %s147
    %p149 = scmp.eq.s32.totalorder %s18, 0
    %p150 = por %p148, %p149
    %s151 = ssub.s32 %s19, %s31
    %s152 = ssub.s32 %s20, %s27
    %s153 = sor.u32 %s151, %s152
    %p154 = scmp.eq.s32.totalorder %s153, 0
    %s156 = sadd.s32 %s155, 1
    %s157 = scalar_select %p154, %s155, %s156
    %p160 = pneg %p154
    %p161 = scmp.eq.s32.totalorder %s12, 1
    %p162 = por %p160, %p161
    %p163 = scmp.ne.s32.totalorder %s155, %s158
    %p164 = scmp.eq.s32.totalorder %s12, 0
    %p165 = por %p163, %p164
    %p166 = scmp.ne.s32.totalorder %s155, %s158
    %p167 = scmp.eq.s32.totalorder %s17, 1
    %p168 = por %p166, %p167
    %p169 = scmp.ne.s32.totalorder %s158, %s159
    %p170 = scmp.eq.s32.totalorder %s17, 0
    %p171 = por %p169, %p170
    %p172 = scmp.ne.s32.totalorder %s158, %s159
    %p173 = scmp.eq.s32.totalorder %s18, 1
    %p174 = por %p172, %p173
    %p176 = scmp.ne.s32.totalorder %s159, %s175
    %p177 = scmp.eq.s32.totalorder %s18, 0
    %p178 = por %p176, %p177
    %p179 = scmp.le.s32.totalorder 1, %s12
    %p180 = scmp.lt.s32.totalorder %s12, 3
    %p181 = pnand %p179, %p180
    %p182 = pneg %p181
    // Predicated region
    $region9: #{attention_forward.1} parent=5 // pred_check
      _
    $region10: #{attention_forward.1} parent=5 // pred_check_branch
      %184 = sbr.rel (%p181) target = $region12
    $region11: #{attention_forward.1} parent=5 // pred_region
      %s185 = ssub.s32 %s12, 1
      // Predicated region
      $region13: #{attention_forward.1} parent=11 // pred_check
        %p186 = pneg %p101
      $region14: #{attention_forward.1} parent=11 // pred_check_branch
        %188 = sbr.rel (%p186) target = $region16
      $region15: #{attention_forward.1} parent=11 // pred_region
        _
      $region16: #{attention_forward.1} parent=11 // pred_fallthru
        _
      // Predicated region
      $region17: #{attention_forward.1} parent=11 // pred_check
        %p189 = pneg %p122
      $region18: #{attention_forward.1} parent=11 // pred_check_branch
        %191 = sbr.rel (%p189) target = $region20
      $region19: #{attention_forward.1} parent=11 // pred_region
        _
      $region20: #{attention_forward.1} parent=11 // pred_fallthru
        _
      // Predicated region
      $region21: #{attention_forward.1} parent=11 // pred_check
        %p192 = pneg %p143
      $region22: #{attention_forward.1} parent=11 // pred_check_branch
        %194 = sbr.rel (%p192) target = $region24
      $region23: #{attention_forward.1} parent=11 // pred_region
        _
      $region24: #{attention_forward.1} parent=11 // pred_fallthru
        _
    $region12: #{attention_forward.1} parent=5 // pred_fallthru
      _
    %p195 = scmp.lt.s32.totalorder %s12, 2
    // Predicated region
    $region25: #{attention_forward.1} parent=5 // pred_check
      %p196 = pneg %p195
    $region26: #{attention_forward.1} parent=5 // pred_check_branch
      %198 = sbr.rel (%p196) target = $region28
    $region27: #{attention_forward.1} parent=5 // pred_region
      // Predicated region
      $region29: #{attention_forward.1} parent=27 // pred_check
        %p199 = pneg %p46
      $region30: #{attention_forward.1} parent=27 // pred_check_branch
        %201 = sbr.rel (%p199) target = $region32
      $region31: #{attention_forward.1} parent=27 // pred_region
        %s202 = smul.u32 2, %s20
        %p203 = scmp.lt.s32.totalorder %s19, 1
        %s204 = scalar_select %p203, %s19, 1
        %p205 = scmp.lt.s32.totalorder %s202, 1
        %s206 = scalar_select %p205, %s202, 1
        %s207 = smul.addr %s204, 2
        %s208 = sadd.s32 %s206, %s207
        %s209 = smul.addr %s208, 2
        %s210 = scalar_lea.vmem %s0, %s209
        %s211 = smul.u32 2, %s20
      $region32: #{attention_forward.1} parent=27 // pred_fallthru
        _
      // Predicated region
      $region33: #{attention_forward.1} parent=27 // pred_check
        %p212 = pneg %p74
      $region34: #{attention_forward.1} parent=27 // pred_check_branch
        %214 = sbr.rel (%p212) target = $region36
      $region35: #{attention_forward.1} parent=27 // pred_region
        %s215 = smul.u32 2, %s20
        %p216 = scmp.lt.s32.totalorder %s19, 1
        %s217 = scalar_select %p216, %s19, 1
        %p218 = scmp.lt.s32.totalorder %s215, 1
        %s219 = scalar_select %p218, %s215, 1
        %s220 = smul.addr %s217, 2
        %s221 = sadd.s32 %s219, %s220
        %s222 = smul.addr %s221, 2
        %s223 = scalar_lea.vmem %s1, %s222
        %s224 = smul.u32 2, %s20
      $region36: #{attention_forward.1} parent=27 // pred_fallthru
        _
    $region28: #{attention_forward.1} parent=5 // pred_fallthru
      _
    %p225 = scmp.le.s32.totalorder 1, %s12
    %p226 = scmp.lt.s32.totalorder %s12, 3
    %p227 = pnand %p225, %p226
    %p228 = pneg %p227
    // Predicated region
    $region37: #{attention_forward.1} parent=5 // pred_check
      _
    $region38: #{attention_forward.1} parent=5 // pred_check_branch
      %230 = sbr.rel (%p227) target = $region40
    $region39: #{attention_forward.1} parent=5 // pred_region
      %s231 = ssub.s32 %s12, 1
      %s232 = smul.u32 2, %s22
      %p233 = scmp.lt.s32.totalorder %s21, 1
      %s234 = scalar_select %p233, %s21, 1
      %p235 = scmp.lt.s32.totalorder %s232, 1
      %s236 = scalar_select %p235, %s232, 1
      %s237 = smul.addr %s234, 2
      %s238 = sadd.s32 %s236, %s237
      %s239 = smul.addr %s238, 2
      %s240 = scalar_lea.vmem %s0, %s239
      %p241 = pneg %p52
      %p242 = pneg %p49
      %s243 = smul.u32 2, %s22
      %p244 = scmp.lt.s32.totalorder %s21, 1
      %s245 = scalar_select %p244, %s21, 1
      %p246 = scmp.lt.s32.totalorder %s243, 1
      %s247 = scalar_select %p246, %s243, 1
      %s248 = smul.addr %s245, 2
      %s249 = sadd.s32 %s247, %s248
      %s250 = smul.addr %s249, 2
      %s251 = scalar_lea.vmem %s1, %s250
      %p252 = pneg %p80
      %p253 = pneg %p77
      %p254 = pneg %p101
      %p255 = pneg %p98
      %p256 = pneg %p122
      %p257 = pneg %p119
      %p258 = pneg %p143
      %p259 = pneg %p140
      %p260 = pneg %p171
      %p261 = pneg %p168
      %s262 = smul.u32 2, %s22
      %p263 = scmp.lt.s32.totalorder %s21, 1
      %s264 = scalar_select %p263, %s21, 1
      %p265 = scmp.lt.s32.totalorder %s262, 1
      %s266 = scalar_select %p265, %s262, 1
      %s267 = smul.addr %s264, 2
      %s268 = sadd.s32 %s266, %s267
      %s269 = scalar_lea.vmem %s5, %s268
      %s270 = smul.u32 2, %s22
      %p271 = scmp.lt.s32.totalorder %s21, 1
      %s272 = scalar_select %p271, %s21, 1
      %p273 = scmp.lt.s32.totalorder %s270, 1
      %s274 = scalar_select %p273, %s270, 1
      %s275 = smul.addr %s272, 2
      %s276 = sadd.s32 %s274, %s275
      %s277 = smul.addr %s276, 2
      %s278 = scalar_lea.vmem %s0, %s277
      %s279 = smul.u32 2, %s22
      %s280 = smul.u32 2, %s22
      %p281 = scmp.lt.s32.totalorder %s21, 1
      %s282 = scalar_select %p281, %s21, 1
      %p283 = scmp.lt.s32.totalorder %s280, 1
      %s284 = scalar_select %p283, %s280, 1
      %s285 = smul.addr %s282, 2
      %s286 = sadd.s32 %s284, %s285
      %s287 = smul.addr %s286, 2
      %s288 = scalar_lea.vmem %s1, %s287
      %s289 = smul.u32 2, %s22
      %s290 = smul.u32 2, %s22
      %p291 = scmp.lt.s32.totalorder %s21, 1
      %s292 = scalar_select %p291, %s21, 1
      %p293 = scmp.lt.s32.totalorder %s290, 1
      %s294 = scalar_select %p293, %s290, 1
      %s295 = smul.addr %s292, 2
      %s296 = sadd.s32 %s294, %s295
      %s297 = scalar_lea.vmem %s5, %s296
      %s298 = smul.u32 2, %s22
      %v300 = vld [vmem:[%s278] sm:$0xf]
      %v301 = vld [vmem:[%s2] sm:$0x3]
      %v302 = vld [vmem:[%s288] sm:$0xf]
      %v303 = vunpack.c.l.bf16 %v302
      %305 = vst [vmem:[#allocation1] ss:$4 sm:$0xff] %v300
      %v306 = vld.sshfl [vmem:[#allocation1] sm:$0xff pattern:$0x73625140]
      %v307 = vld.sshfl [vmem:[#allocation1 + $0x8] sm:$0xff pattern:$0x73625140]
      %309 = vst [vmem:[#allocation1] ss:$2 sm:$0xff] %v303
      %v310 = vld.sshfl [vmem:[#allocation1] sm:$0xff pattern:$0x75316420]
      %v311 = vld.sshfl [vmem:[#allocation1 + $0x8] sm:$0xff pattern:$0x75316420]
      %vm314 = vcmask 31744
      %v316 = vsel %vm314, %v301, 0
      %vm318 = vcmask 1041408
      %v319 = vsel %vm318, %v306, 0
      %v321 = vsel %vm318, %v307, 0
      %323 = vmatpush.bf16.msra.mxu0 0
      %324 = vmatpush.bf16.msra.mxu0 0
      %325 = vmatpush.bf16.msra.mxu0 0
      %326 = vmatpush.bf16.msra.mxu0 0
      %327 = vmatpush.bf16.msra.mxu0 0
      %328 = vmatpush.bf16.msra.mxu0 0
      %329 = vmatpush.bf16.msra.mxu0 0
      %330 = vmatpush.bf16.msra.mxu0 %v319
      %331 = vmatmul.bf16.gmra.mxu0 %v316
      %v332 = vpop.f32.mrf.mxu0
      %v333 = vadd.f32 %v310, %v332
      %v334 = vpop.f32.mrf.mxu0
      %335 = vdwg.mxu0
      %336 = vmatpush.bf16.msra.mxu0 0
      %337 = vmatpush.bf16.msra.mxu0 0
      %338 = vmatpush.bf16.msra.mxu0 0
      %339 = vmatpush.bf16.msra.mxu0 0
      %340 = vmatpush.bf16.msra.mxu0 0
      %341 = vmatpush.bf16.msra.mxu0 0
      %342 = vmatpush.bf16.msra.mxu0 0
      %343 = vmatpush.bf16.msra.mxu0 %v321
      %344 = vmatmul.bf16.gmra.mxu0 %v316
      %v345 = vpop.f32.mrf.mxu0
      %v346 = vadd.f32 %v311, %v345
      %v347 = vpop.f32.mrf.mxu0
      %348 = vdwg.mxu0
      %v349 = vmax.f32 %v333, 0.0
      %v350 = vmax.f32 %v346, 0.0
      %v351 = vld [vmem:[%s3] sm:$0xf]
      %353 = vset.pattern.permute.xlu0 0
      %354 = vperm.xlu0 %353, %v351
      %v355 = vpop.permute.xlu0 %354
      %v357 = vmul.f32 %v355, %v349
      %v358 = vmul.f32 %v355, %v350
      %vm359 = vcmask 1043456
      %v360 = vsel %vm359, %v357, 0.0
      %v361 = vrot.slane %v360, 4
      %v362 = vadd.f32 %v360, %v361
      %v363 = vrot.slane %v362, 2
      %v364 = vadd.f32 %v362, %v363
      %v365 = vrot.slane %v364, 1
      %v366 = vadd.f32 %v364, %v365
      %v367 = vsel %vm359, %v358, 0.0
      %v368 = vrot.slane %v367, 4
      %v369 = vadd.f32 %v367, %v368
      %v370 = vrot.slane %v369, 2
      %v371 = vadd.f32 %v369, %v370
      %v372 = vrot.slane %v371, 1
      %v373 = vadd.f32 %v371, %v372
      %s374 = sld [smem:[#allocation2]]
      %v375 = vstv %s374
      %v376 = vadd.f32 %v366, %v375
      %v377 = vadd.f32 %v373, %v375
      %v378 = vsub.f32 0.0, %v376
      %v379 = vsub.f32 0.0, %v377
      %v380 = vmul.f32 %v378, 1.442695
      %v381 = vpow.pop %v380
      %v382 = vmul.f32 %v379, 1.442695
      %v383 = vpow.pop %v382
      %v384 = vadd.f32 %v381, 1.0
      %v385 = vadd.f32 %v383, 1.0
      %v386 = vrcp.pop %v384
      %v387 = vrcp.pop %v385
      %v390 = vrot.slane %v387, 7
      %vm391 = vcmask 1040384
      %v392 = vsel %vm391, %v386, %v390
      %v394 = vlaneseq
      %vm395 = vcmp.ge.s32.totalorder %v394, 0
      %vm396 = vcmp.lt.s32.totalorder %v394, 256
      %vm397 = vmand %vm395, %vm396
      %398 = vst.msk [vmem:[%s297] sm:$0x3] %vm397, %v392
      %s399 = smul.u32 2, %s22
      %p400 = scmp.lt.s32.totalorder %s21, 1
      %s401 = scalar_select %p400, %s21, 1
      %p402 = scmp.lt.s32.totalorder %s399, 1
      %s403 = scalar_select %p402, %s399, 1
      %s404 = smul.addr %s401, 2
      %s405 = sadd.s32 %s403, %s404
      %s406 = scalar_lea.vmem %s5, %s405
      // Predicated region
      $region41: #{attention_forward.1} parent=39 // pred_check
        %p407 = pneg %p168
      $region42: #{attention_forward.1} parent=39 // pred_check_branch
        %409 = sbr.rel (%p407) target = $region44
      $region43: #{attention_forward.1} parent=39 // pred_region
        %s410 = smul.u32 2, %s22
      $region44: #{attention_forward.1} parent=39 // pred_fallthru
        _
    $region40: #{attention_forward.1} parent=5 // pred_fallthru
      _
    %p411 = scmp.le.s32.totalorder 2, %s12
    // Predicated region
    $region45: #{attention_forward.1} parent=5 // pred_check
      %p412 = pneg %p411
    $region46: #{attention_forward.1} parent=5 // pred_check_branch
      %414 = sbr.rel (%p412) target = $region48
    $region47: #{attention_forward.1} parent=5 // pred_region
      %s415 = ssub.s32 %s12, 2
      // Predicated region
      $region49: #{attention_forward.1} parent=47 // pred_check
        %p416 = pneg %p174
      $region50: #{attention_forward.1} parent=47 // pred_check_branch
        %418 = sbr.rel (%p416) target = $region52
      $region51: #{attention_forward.1} parent=47 // pred_region
        %s419 = smul.u32 2, %s24
        %p420 = scmp.lt.s32.totalorder %s23, 1
        %s421 = scalar_select %p420, %s23, 1
        %p422 = scmp.lt.s32.totalorder %s419, 1
        %s423 = scalar_select %p422, %s419, 1
        %s424 = smul.addr %s421, 2
        %s425 = sadd.s32 %s423, %s424
        %s426 = scalar_lea.vmem %s5, %s425
      $region52: #{attention_forward.1} parent=47 // pred_fallthru
        _
    $region48: #{attention_forward.1} parent=5 // pred_fallthru
      _
  $region6: #{attention_forward.1} parent=0 // loop_footer
    %s16 = sadd.s32 1, %s12
  $region7: #{attention_forward.1} parent=0 // loop_footer_branch
    %11 = sbr.rel target = $region3
  $region8: #{attention_forward.1} parent=0 // loop_exit
    _

</llo_original>
